<compile_context>
chip_gen: v7x
topology: tpu7x:2x2x1
jax: 0.10.0
libtpu: 0.0.40
codegen_flags: <defaults>
</compile_context>

<pallas_src>
import functools
from itertools import combinations

import numpy as np
import jax
import jax.numpy as jnp
from jax.experimental import pallas as pl
from jax.experimental.pallas import tpu as pltpu


# ---------------------------------------------------------------------------
# VMEM budgeting helpers
# ---------------------------------------------------------------------------

@functools.lru_cache(maxsize=None)
def _vmem_limit_bytes():
    """Generation-aware scoped-VMEM limit: ~3/4 of physical VMEM, capped at
    96 MiB (v5e/v6e have 128 MiB physical, v7x only 64 MiB).  Falls back to a
    v7x-safe 48 MiB if the hardware query is unavailable."""
    cap = None
    try:
        cap = getattr(pltpu.get_tpu_info(), "vmem_capacity_bytes", None)
    except Exception:
        cap = None
    if not cap:
        cap = 64 * 1024 * 1024
    return int(min(cap * 3 // 4, 96 * 1024 * 1024))


def _round_up(v, m):
    return ((v + m - 1) // m) * m


def _choose_batch_tile(batch, bytes_per_row, *, fixed_bytes=0, min_tile=8,
                       max_tile=4096, budget_frac=0.7):
    """Pick a batch tile.

    bytes_per_row: per-batch-row VMEM bytes across all streamed blocks (1 buffer).
    fixed_bytes:   per-step VMEM bytes that do NOT scale with the batch tile
                   (e.g. the (PG, D, D) matrix block), single buffer.
    Result is a multiple of 8 (or == batch), double-buffer aware.
    """
    budget = int(budget_frac * _vmem_limit_bytes()) - 2 * fixed_bytes
    budget = max(budget, 2 * bytes_per_row * min_tile)
    bt = budget // (2 * bytes_per_row)                 # x2: double buffering
    bt = max(min_tile, min(max_tile, bt))
    if bt >= batch:
        # Keep >=2 grid steps when the batch allows it: enables DMA/compute
        # pipelining and lets both v7x TensorCores take a share of the grid.
        if batch >= 2 * max(min_tile, 8):
            return min(batch, _round_up(-(-batch // 2), 8))
        return batch
    return max(min_tile, (bt // 8) * 8)


def _compiler_params(semantics):
    return pltpu.CompilerParams(dimension_semantics=semantics,
                                vmem_limit_bytes=_vmem_limit_bytes())


# ---------------------------------------------------------------------------
# kernels
# ---------------------------------------------------------------------------

def _bi_interaction_kernel(x_ref, o_ref):
    # x: (Bt, F, D) -> o: (Bt, D)  0.5 * ((sum_f x)^2 - sum_f x^2)
    # multiplies in native dtype, accumulation in f32.
    x = x_ref[...]
    s = jnp.sum(x, axis=1, dtype=jnp.float32)
    sq = jnp.sum(x * x, axis=1, dtype=jnp.float32)
    o_ref[...] = (0.5 * (s * s - sq)).astype(o_ref.dtype)


def _product_sum_pooling_kernel(x_ref, o_ref):
    # x: (Bt, F, D) -> o: (Bt, 1)
    x = x_ref[...]
    s = jnp.sum(x, axis=1, dtype=jnp.float32)
    sq = jnp.sum(x * x, axis=1, dtype=jnp.float32)
    bi = 0.5 * (s * s - sq)
    o_ref[...] = jnp.sum(bi, axis=-1, keepdims=True).astype(o_ref.dtype)


def _inner_product_kernel(x_ref, o_ref, *, num_fields):
    # x: (Bt, F, D) -> o: (Bt, P), P = F*(F-1)/2, combinations (i<j) order.
    # Pair products group-by-group (x read once), reductions in f32, and a
    # single lane-dense store of the full (Bt, P) block at the end.
    x = x_ref[...]
    parts = []
    for i in range(num_fields - 1):
        prod = x[:, i:i + 1, :] * x[:, i + 1:, :]            # (Bt, F-1-i, D)
        parts.append(jnp.sum(prod, axis=-1, dtype=jnp.float32))
    o_ref[...] = jnp.concatenate(parts, axis=-1).astype(o_ref.dtype)


def _elementwise_product_kernel(x_ref, o_ref, *, num_fields):
    # x: (Bt, F, D) -> o: (Bt, P, D); assemble the whole block, one dense store.
    x = x_ref[...]
    groups = []
    for i in range(num_fields - 1):
        groups.append(x[:, i + 1:, :] * x[:, i:i + 1, :])     # (Bt, F-1-i, D)
    o_ref[...] = jnp.concatenate(groups, axis=1)


def _all_product_kernel(x_ref, *o_refs):
    # x: (Bt, F, D) -> F outputs, o[f] = x * x[:, f:f+1, :]
    x = x_ref[...]
    for f, o_ref in enumerate(o_refs):
        o_ref[...] = x * x[:, f:f + 1, :]


def _matrix_product_kernel(fp_ref, fq_ref, x_ref, m_ref, o_ref, *, pair_group):
    # x: (Bt, F, D) resident tile; m: (PG, D, D); o: (Bt, PG, D).
    # Pair rows are gathered in-VMEM with the scalar-prefetched field indices;
    # PG matmuls per step, f32 accumulation, one sublane-dense store.
    g = pl.program_id(1)
    results = []
    for j in range(pair_group):
        p = g * pair_group + j                                # global pair index
        a = x_ref[:, pl.ds(fp_ref[p], 1), :][:, 0, :]         # (Bt, D) native dtype
        b = x_ref[:, pl.ds(fq_ref[p], 1), :][:, 0, :]         # (Bt, D) native dtype
        t = jnp.dot(a, m_ref[j], preferred_element_type=jnp.float32)
        results.append((t * b.astype(jnp.float32)).astype(o_ref.dtype)[:, None, :])
    o_ref[...] = jnp.concatenate(results, axis=1)


# ---------------------------------------------------------------------------
# pallas_call wrappers
# ---------------------------------------------------------------------------

def bi_interaction_pooling(x):
    B, F, D = x.shape
    isz = x.dtype.itemsize
    bt = _choose_batch_tile(B, (F * D + D) * isz)
    return pl.pallas_call(
        _bi_interaction_kernel,
        out_shape=jax.ShapeDtypeStruct((B, D), x.dtype),
        grid=(pl.cdiv(B, bt),),
        in_specs=[pl.BlockSpec((bt, F, D), lambda b: (b, 0, 0))],
        out_specs=pl.BlockSpec((bt, D), lambda b: (b, 0)),
        compiler_params=_compiler_params(("parallel",)),
    )(x)


def product_sum_pooling(x):
    B, F, D = x.shape
    isz = x.dtype.itemsize
    bt = _choose_batch_tile(B, (F * D + 1) * isz)
    return pl.pallas_call(
        _product_sum_pooling_kernel,
        out_shape=jax.ShapeDtypeStruct((B, 1), x.dtype),
        grid=(pl.cdiv(B, bt),),
        in_specs=[pl.BlockSpec((bt, F, D), lambda b: (b, 0, 0))],
        out_specs=pl.BlockSpec((bt, 1), lambda b: (b, 0)),
        compiler_params=_compiler_params(("parallel",)),
    )(x)


def inner_product(x):
    B, F, D = x.shape
    P = F * (F - 1) // 2
    isz = x.dtype.itemsize
    bt = _choose_batch_tile(B, (F * D + P) * isz)
    return pl.pallas_call(
        functools.partial(_inner_product_kernel, num_fields=F),
        out_shape=jax.ShapeDtypeStruct((B, P), x.dtype),
        grid=(pl.cdiv(B, bt),),
        in_specs=[pl.BlockSpec((bt, F, D), lambda b: (b, 0, 0))],
        out_specs=pl.BlockSpec((bt, P), lambda b: (b, 0)),
        compiler_params=_compiler_params(("parallel",)),
    )(x)


def elementwise_product(x):
    B, F, D = x.shape
    P = F * (F - 1) // 2
    isz = x.dtype.itemsize
    bt = _choose_batch_tile(B, (F + P) * D * isz)
    return pl.pallas_call(
        functools.partial(_elementwise_product_kernel, num_fields=F),
        out_shape=jax.ShapeDtypeStruct((B, P, D), x.dtype),
        grid=(pl.cdiv(B, bt),),
        in_specs=[pl.BlockSpec((bt, F, D), lambda b: (b, 0, 0))],
        out_specs=pl.BlockSpec((bt, P, D), lambda b: (b, 0, 0)),
        compiler_params=_compiler_params(("parallel",)),
    )(x)


def all_product(x):
    # One kernel, F separate outputs: x is read from HBM once and no post-kernel
    # slicing copies are made.
    B, F, D = x.shape
    isz = x.dtype.itemsize
    bt = _choose_batch_tile(B, (F * D + F * F * D) * isz)
    out_shape = tuple(jax.ShapeDtypeStruct((B, F, D), x.dtype) for _ in range(F))
    out_specs = [pl.BlockSpec((bt, F, D), lambda b: (b, 0, 0)) for _ in range(F)]
    outs = pl.pallas_call(
        _all_product_kernel,
        out_shape=out_shape,
        grid=(pl.cdiv(B, bt),),
        in_specs=[pl.BlockSpec((bt, F, D), lambda b: (b, 0, 0))],
        out_specs=out_specs,
        compiler_params=_compiler_params(("parallel",)),
    )(x)
    return list(outs)


def matrix_product(x, matrix, field_p, field_q, *, pair_group=8):
    B, F, D = x.shape
    P = int(field_p.shape[0])
    pg = min(pair_group, P)
    n_groups = -(-P // pg)

    # Pad the scalar-prefetched pair indices so a partial last pair-group never
    # reads out-of-range SMEM; the matching output rows are clipped by Pallas
    # edge-block handling so their values never land in HBM.
    p_pad = n_groups * pg
    fp = jnp.asarray(field_p, dtype=jnp.int32)
    fq = jnp.asarray(field_q, dtype=jnp.int32)
    if p_pad != P:
        pad = jnp.zeros((p_pad - P,), dtype=jnp.int32)
        fp = jnp.concatenate([fp, pad])
        fq = jnp.concatenate([fq, pad])

    # VMEM sizing: matrix block is a per-step *fixed* cost (does not scale with
    # the batch tile); per-row cost is the resident x tile + the output group.
    bytes_per_row = (F * D + pg * D) * x.dtype.itemsize
    fixed = pg * D * D * matrix.dtype.itemsize
    bt = _choose_batch_tile(B, bytes_per_row, fixed_bytes=fixed,
                            min_tile=256, max_tile=1024)

    grid = (pl.cdiv(B, bt), n_groups)
    x_spec = pl.BlockSpec((bt, F, D), lambda b, g, fp, fq: (b, 0, 0))   # resident over g
    m_spec = pl.BlockSpec((pg, D, D), lambda b, g, fp, fq: (g, 0, 0))
    o_spec = pl.BlockSpec((bt, pg, D), lambda b, g, fp, fq: (b, g, 0))

    return pl.pallas_call(
        functools.partial(_matrix_product_kernel, pair_group=pg),
        out_shape=jax.ShapeDtypeStruct((B, P, D), x.dtype),
        grid_spec=pltpu.PrefetchScalarGridSpec(
            num_scalar_prefetch=2,
            grid=grid,
            in_specs=[x_spec, m_spec],
            out_specs=o_spec,
        ),
        compiler_params=_compiler_params(("parallel", "arbitrary")),
    )(fp, fq, x, matrix)


# ---------------------------------------------------------------------------
# Module port
# ---------------------------------------------------------------------------

class InnerProductLayer:
    """JAX/Pallas port of the PyTorch InnerProductLayer.
    output: product_sum_pooling (bs x 1),
            Bi_interaction_pooling (bs x dim),
            inner_product (bs x F*(F-1)/2),
            elementwise_product (bs x F*(F-1)/2 x emb_dim)
    """

    _VALID = ["product_sum_pooling", "Bi_interaction_pooling", "inner_product",
              "elementwise_product", "all_product", "matrix_product"]

    def __init__(self, num_fields=None, output="product_sum_pooling"):
        self.num_fields = num_fields
        self._output_type = output
        if output not in self._VALID:
            raise ValueError(f"InnerProductLayer output={output} is not supported.")
        if num_fields is None:
            if output in ["inner_product", "elementwise_product", "all_product"]:
                raise ValueError(
                    f"num_fields is required when InnerProductLayer output={output}.")
        else:
            p, q = zip(*list(combinations(range(num_fields), 2)))
            self.field_p = jnp.asarray(p, dtype=jnp.int32)
            self.field_q = jnp.asarray(q, dtype=jnp.int32)
            self.interaction_units = int(num_fields * (num_fields - 1) / 2)

    def __call__(self, feature_emb, matrix=None):
        out = self._output_type
        if out == "Bi_interaction_pooling":
            return bi_interaction_pooling(feature_emb)
        elif out == "product_sum_pooling":
            return product_sum_pooling(feature_emb)
        elif out == "elementwise_product":
            return elementwise_product(feature_emb)
        elif out == "matrix_product":
            if matrix is None:
                raise ValueError("matrix_product output requires `matrix`.")
            return matrix_product(feature_emb, matrix, self.field_p, self.field_q)
        elif out == "all_product":
            return all_product(feature_emb)           # list of F (B, F, D) arrays
        elif out == "inner_product":
            # combinations (i<j) order == torch.triu(.., 1) row-major order
            return inner_product(feature_emb)


# ---------------------------------------------------------------------------
# Test
# ---------------------------------------------------------------------------

if __name__ == "__main__":
    B, F, D = 2, 4, 32
    P = F * (F - 1) // 2

    key = jax.random.PRNGKey(0)
    k1, k2, k3 = jax.random.split(key, 3)
    x = jax.random.normal(k1, (B, F, D), dtype=jnp.float32)
    matrix = jax.random.normal(k2, (P, D, D), dtype=jnp.float32)

    # pure-JAX references
    p_idx, q_idx = zip(*combinations(range(F), 2))
    p_idx = jnp.asarray(p_idx)
    q_idx = jnp.asarray(q_idx)
    s = jnp.sum(x, axis=1)
    sq = jnp.sum(x * x, axis=1)
    bi_ref = 0.5 * (s * s - sq)
    psp_ref = jnp.sum(bi_ref, axis=-1, keepdims=True)
    ip_ref = jnp.sum(x[:, p_idx, :] * x[:, q_idx, :], axis=-1)   # VPU-exact reference
    ep_ref = x[:, p_idx, :] * x[:, q_idx, :]
    mp_ref = jnp.einsum("bpd,pde->bpe", x[:, p_idx, :], matrix,
                        precision=jax.lax.Precision.HIGHEST) * x[:, q_idx, :]
    ap_ref = [x * x[:, f:f + 1, :] for f in range(F)]

    out_psp = jax.block_until_ready(
        InnerProductLayer(num_fields=F, output="product_sum_pooling")(x))
    out_bi = jax.block_until_ready(
        InnerProductLayer(num_fields=F, output="Bi_interaction_pooling")(x))
    out_ip = jax.block_until_ready(
        InnerProductLayer(num_fields=F, output="inner_product")(x))
    out_ep = jax.block_until_ready(
        InnerProductLayer(num_fields=F, output="elementwise_product")(x))
    out_mp = jax.block_until_ready(
        InnerProductLayer(num_fields=F, output="matrix_product")(x, matrix=matrix))
    out_ap = [jax.block_until_ready(o) for o in
              InnerProductLayer(num_fields=F, output="all_product")(x)]

    np.testing.assert_allclose(np.asarray(out_psp), np.asarray(psp_ref), rtol=1e-5, atol=1e-5)
    np.testing.assert_allclose(np.asarray(out_bi), np.asarray(bi_ref), rtol=1e-5, atol=1e-5)
    np.testing.assert_allclose(np.asarray(out_ip), np.asarray(ip_ref), rtol=1e-5, atol=1e-5)
    np.testing.assert_allclose(np.asarray(out_ep), np.asarray(ep_ref), rtol=1e-5, atol=1e-5)
    # MXU matmul in the kernel uses the hardware default (bf16 passes, f32 accum);
    # compared against a HIGHEST-precision reference, so allow a loose tolerance.
    np.testing.assert_allclose(np.asarray(out_mp), np.asarray(mp_ref), rtol=1e-2, atol=1e-2)
    for o, r in zip(out_ap, ap_ref):
        np.testing.assert_allclose(np.asarray(o), np.asarray(r), rtol=1e-5, atol=1e-5)

    assert out_psp.shape == (B, 1)
    assert out_bi.shape == (B, D)
    assert out_ip.shape == (B, P)
    assert out_ep.shape == (B, P, D)
    assert out_mp.shape == (B, P, D)
    assert len(out_ap) == F and out_ap[0].shape == (B, F, D)

    # Ragged-batch check (batch not a multiple of the tile -> exercises Pallas
    # edge-block clipping on the streaming kernels).
    B2 = 20
    x2 = jax.random.normal(k3, (B2, F, D), dtype=jnp.float32)
    bi2 = jax.block_until_ready(bi_interaction_pooling(x2))
    ip2 = jax.block_until_ready(inner_product(x2))
    s2 = jnp.sum(x2, axis=1)
    sq2 = jnp.sum(x2 * x2, axis=1)
    np.testing.assert_allclose(np.asarray(bi2), np.asarray(0.5 * (s2 * s2 - sq2)),
                               rtol=1e-5, atol=1e-5)
    np.testing.assert_allclose(
        np.asarray(ip2),
        np.asarray(jnp.sum(x2[:, p_idx, :] * x2[:, q_idx, :], axis=-1)),
        rtol=1e-5, atol=1e-5)

    print("KERNEL_OK")
</pallas_src>

<mosaic_0001>
module attributes {stable_mosaic.version = 11 : i64} {
  func.func @_product_sum_pooling_kernel(%arg0: i32, %arg1: memref<2x4x32xf32, #tpu.memory_space<vmem>>, %arg2: memref<2x1xf32, #tpu.memory_space<vmem>>) attributes {dimension_semantics = [#tpu.dimension_semantics<parallel>], iteration_bounds = array<i64: 1>, scalar_prefetch = 0 : i64, scratch_operands = 0 : i64, tpu.core_type = #tpu.core_type<tc>, window_params = [{transform_indices = @transform_0, window_bounds = array<i64: 2, 4, 32>}, {transform_indices = @transform_1, window_bounds = array<i64: 2, 1>}]} {
    %c0 = arith.constant 0 : index
    %c0_0 = arith.constant 0 : index
    %c0_1 = arith.constant 0 : index
    %0 = vector.load %arg1[%c0, %c0_0, %c0_1] : memref<2x4x32xf32, #tpu.memory_space<vmem>>, vector<2x4x32xf32>
    %cst = arith.constant dense<0.000000e+00> : vector<2x32xf32>
    %1 = vector.multi_reduction <add>, %0, %cst [1] : vector<2x4x32xf32> to vector<2x32xf32>
    %2 = arith.mulf %0, %0 : vector<2x4x32xf32>
    %cst_2 = arith.constant dense<0.000000e+00> : vector<2x32xf32>
    %3 = vector.multi_reduction <add>, %2, %cst_2 [1] : vector<2x4x32xf32> to vector<2x32xf32>
    %4 = arith.mulf %1, %1 : vector<2x32xf32>
    %5 = arith.subf %4, %3 : vector<2x32xf32>
    %cst_3 = arith.constant 5.000000e-01 : f32
    %6 = vector.broadcast %cst_3 : f32 to vector<2x32xf32>
    %7 = arith.mulf %6, %5 : vector<2x32xf32>
    %cst_4 = arith.constant dense<0.000000e+00> : vector<2xf32>
    %8 = vector.multi_reduction <add>, %7, %cst_4 [1] : vector<2x32xf32> to vector<2xf32>
    %9 = vector.shape_cast %8 : vector<2xf32> to vector<2x1xf32>
    %c0_5 = arith.constant 0 : index
    %c0_6 = arith.constant 0 : index
    %10 = vector.load %arg2[%c0_5, %c0_6] : memref<2x1xf32, #tpu.memory_space<vmem>>, vector<2x1xf32>
    tpu.vector_store %arg2[%c0_5, %c0_6], %9 {strides = array<i32>} : memref<2x1xf32, #tpu.memory_space<vmem>>, vector<2x1xf32>,
    return
  }
  func.func @transform_0(%arg0: i32) -> (i32, i32, i32) {
    %c0_i32 = arith.constant 0 : i32
    %c0_i32_0 = arith.constant 0 : i32
    %c0_i32_1 = arith.constant 0 : i32
    return %arg0, %c0_i32, %c0_i32_0 : i32, i32, i32
  }
  func.func @transform_1(%arg0: i32) -> (i32, i32) {
    %c0_i32 = arith.constant 0 : i32
    %c0_i32_0 = arith.constant 0 : i32
    return %arg0, %c0_i32 : i32, i32
  }
}

</mosaic_0001>

<llo_original>
// kernel: tpu_custom_call.1
$region0: #{tpu_custom_call.1}
  #allocation0 [shape = 'u32[]', space=smem, size = 0x4, offset = 0x4, fixed_abs, tag = 'smem constant byte address 0x4 - core index']
  #allocation1 [shape = 'u32[144,128]{1,0:T(1,128)}', space=vmem, size = 0x12000, scoped, tag = 'internal scratch']
  %s0 = inlined_call_operand.hbm [shape: f32[2,4,32], index: 0, kind: input, shape index: {}]
  %s1 = inlined_call_operand.vmem [shape: f32[2,1], index: 1, kind: output, shape index: {}]
  %s2 = sld [smem:[#allocation0]]
  $region18: #{tpu_custom_call.1} parent=0
    _
  %s4 = ssub.s32 1, %s2
  %s5 = scalar_select 0, %s4, %s2
  $region1: #{tpu_custom_call.1} parent=0
    #allocation2 [shape = 'u8[4096]{0}', space=vmem, size = 0x1000, scoped, tag = 'input window, operand 0, single buffered']
    #allocation3 [shape = 's32[1]{0}', space=sflag, size = 0x4, scoped, tag = 'scoped memory for tpu_custom_call.1']
    %6 = vsyncpa [#allocation3], 0
    // Predicated region
    $region2: #{tpu_custom_call.1} parent=1 // pred_check
      _
    $region3: #{tpu_custom_call.1} parent=1 // pred_check_branch
      %8 = sbr.rel (0) target = $region5
    $region4: #{tpu_custom_call.1} parent=1 // pred_region
      %s10 = ssub.s32 128, 128
      %11 = vsyncadd [#allocation3], %s10
      %s12 = sshll.u32 [#allocation2], 4
      %s13 = int_to_ptr.vmem [resolvable:$true] %s12
      %18 = dma.hbm_to_vmem [thread:$0]  %s0, 128, %s13, [#allocation3], 64, 64, 4
    $region5: #{tpu_custom_call.1} parent=1 // pred_fallthru
      _
    // Predicated region
    $region6: #{tpu_custom_call.1} parent=1 // pred_check
      _
    $region7: #{tpu_custom_call.1} parent=1 // pred_check_branch
      %20 = sbr.rel (0) target = $region9
    $region8: #{tpu_custom_call.1} parent=1 // pred_region
      %21 = dma.done [#allocation3], 128
    $region9: #{tpu_custom_call.1} parent=1 // pred_fallthru
      _
    %v22 = vld [vmem:[#allocation2] sm:$0xf]
    %v23 = vld [vmem:[#allocation2 + $0x4] sm:$0xf]
    %vm24 = vcmask 257024
    %v25 = vsel %vm24, %v22, 0.0
    %v26 = vrot.slane %v25, 4
    %v27 = vadd.f32 %v25, %v26
    %v28 = vrot.slane %v27, 2
    %v29 = vadd.f32 %v27, %v28
    %v30 = vrot.slane %v29, 1
    %v31 = vadd.f32 %v29, %v30
    %v32 = vsel %vm24, %v23, 0.0
    %v33 = vrot.slane %v32, 4
    %v34 = vadd.f32 %v32, %v33
    %v35 = vrot.slane %v34, 2
    %v36 = vadd.f32 %v34, %v35
    %v37 = vrot.slane %v36, 1
    %v38 = vadd.f32 %v36, %v37
    %v39 = vmul.f32 %v22, %v22
    %v40 = vmul.f32 %v23, %v23
    %v41 = vsel %vm24, %v39, 0.0
    %v42 = vrot.slane %v41, 4
    %v43 = vadd.f32 %v41, %v42
    %v44 = vrot.slane %v43, 2
    %v45 = vadd.f32 %v43, %v44
    %v46 = vrot.slane %v45, 1
    %v47 = vadd.f32 %v45, %v46
    %v48 = vsel %vm24, %v40, 0.0
    %v49 = vrot.slane %v48, 4
    %v50 = vadd.f32 %v48, %v49
    %v51 = vrot.slane %v50, 2
    %v52 = vadd.f32 %v50, %v51
    %v53 = vrot.slane %v52, 1
    %v54 = vadd.f32 %v52, %v53
    %v55 = vmul.f32 %v31, %v31
    %v56 = vmul.f32 %v38, %v38
    %v57 = vsub.f32 %v55, %v47
    %v58 = vsub.f32 %v56, %v54
    %v59 = vmul.f32 %v57, 0.5
    %v60 = vmul.f32 %v58, 0.5
    %vm63 = vcmask 1041409
    %v64 = vsel %vm63, %v60, %v59
    %vm66 = vcmask 254976
    %v67 = vsel %vm66, %v64, 0.0
    %68 = vadd.xlane.f32.xlu0 %v67
    %v69 = vpop.xlane.xlu0 %68
    %vm70 = vcmask 1024
    %71 = vst.msk [vmem:[%s1] sm:$0x3] %vm70, %v69
    // Predicated region
    $region10: #{tpu_custom_call.1} parent=1 // pred_check
      _
    $region11: #{tpu_custom_call.1} parent=1 // pred_check_branch
      %73 = sbr.rel (0) target = $region13
    $region12: #{tpu_custom_call.1} parent=1 // pred_region
      _
    $region13: #{tpu_custom_call.1} parent=1 // pred_fallthru
      _
    // Predicated region
    $region14: #{tpu_custom_call.1} parent=1 // pred_check
      _
    $region15: #{tpu_custom_call.1} parent=1 // pred_check_branch
      %75 = sbr.rel (0) target = $region17
    $region16: #{tpu_custom_call.1} parent=1 // pred_region
      _
    $region17: #{tpu_custom_call.1} parent=1 // pred_fallthru
      _
    %76 = vsyncpa [#allocation3], 1

</llo_original>
